<compile_context>
chip_gen: v5e
topology: v5e:2x2
jax: 0.10.0
libtpu: 0.0.40
codegen_flags: <defaults>
</compile_context>

<pallas_src>
import functools

import jax
import jax.numpy as jnp
from jax.experimental import pallas as pl
from jax.experimental.pallas import tpu as pltpu


def _critic_kernel(s_ref, a_ref, w1s_ref, w1a_ref, b1_ref,
                   w2_ref, b2_ref, w3_ref, b3_ref, o_ref):
    wdt = w1s_ref.dtype

    # Layer 1: concat folded into two summed MXU dots (s @ W1s + a @ W1a).
    h1 = jnp.dot(s_ref[...].astype(wdt), w1s_ref[...],
                 preferred_element_type=jnp.float32)
    h1 = h1 + jnp.dot(a_ref[...].astype(wdt), w1a_ref[...],
                      preferred_element_type=jnp.float32)
    h1 = jnp.maximum(h1 + b1_ref[...], 0.0)        # f32 bias-add + ReLU (VPU)

    # Layer 2: 256 -> 256 on the MXU.
    h2 = jnp.dot(h1.astype(wdt), w2_ref[...],
                 preferred_element_type=jnp.float32)
    h2 = jnp.maximum(h2 + b2_ref[...], 0.0)

    # Layer 3 (256 -> 1): VPU multiply + XLU lane reduce instead of an N=1
    # matmul; avoids a lane-width-1 vmatmul and keeps the MXU free.
    out = jnp.sum(h2 * w3_ref[...], axis=-1, keepdims=True) + b3_ref[...]
    o_ref[...] = out.astype(o_ref.dtype)


def _round_up(x, m):
    return (x + m - 1) // m * m


@functools.partial(jax.jit, static_argnames=("block_b",))
def critic_forward(s, a, params, *, block_b=128):
    """Pallas forward for Critic_NN. s: (B, state_s), a: (B, action_s)."""
    w1s, w1a, b1, w2, b2, w3_row, b3 = params
    B, d_s = s.shape
    d_a = a.shape[1]
    h1 = w1s.shape[1]
    h2 = w2.shape[1]
    d_out = b3.shape[1]

    # Batch tile: multiple of 8 sublanes, capped at block_b; pad B up to it.
    tb = min(block_b, _round_up(B, 8))
    n_b = pl.cdiv(B, tb)
    b_pad = n_b * tb
    if b_pad != B:
        s = jnp.pad(s, ((0, b_pad - B), (0, 0)))
        a = jnp.pad(a, ((0, b_pad - B), (0, 0)))

    batch_spec = lambda d: pl.BlockSpec((tb, d), lambda i: (i, 0))
    resident = lambda shape: pl.BlockSpec(shape, lambda i: (0, 0))

    def nbytes(x):
        return x.size * jnp.dtype(x.dtype).itemsize

    flops = 2 * B * (d_s * h1 + d_a * h1 + h1 * h2 + h2 * d_out)
    bytes_accessed = (sum(nbytes(w) for w in (w1s, w1a, b1, w2, b2, w3_row, b3))
                      + 4 * B * (d_s + d_a + d_out))

    out = pl.pallas_call(
        _critic_kernel,
        out_shape=jax.ShapeDtypeStruct((b_pad, d_out), jnp.float32),
        grid=(n_b,),
        in_specs=[
            batch_spec(d_s),                              # s tile
            batch_spec(d_a),                              # a tile
            resident((d_s, h1)), resident((d_a, h1)),     # W1 split (resident)
            resident((1, h1)),                            # b1
            resident((h1, h2)), resident((1, h2)),        # W2, b2
            resident((1, h2)), resident((1, d_out)),      # W3 row, b3
        ],
        out_specs=batch_spec(d_out),
        compiler_params=pltpu.CompilerParams(
            dimension_semantics=("parallel",),            # 2 TCs on v7x
            vmem_limit_bytes=16 << 20,                    # footprint ~1.5 MiB
        ),
        cost_estimate=pl.CostEstimate(
            flops=flops, transcendentals=0, bytes_accessed=bytes_accessed),
    )(s, a, w1s, w1a, b1, w2, b2, w3_row, b3)

    return out[:B]


def init_critic_params(key, state_s=24, action_s=4, h1_s=256, h2_s=256,
                       out_s=1, param_dtype=jnp.float32):
    """nn.Linear-style U(-1/sqrt(fan_in), 1/sqrt(fan_in)) init.

    W1 is stored pre-split into (state_s, h1) and (action_s, h1); W3 is stored
    as a (1, h2) row for the VPU head. Biases and W3 stay f32; W1/W2 may be
    cast to bf16 via param_dtype for halved weight DMA + 2x MXU throughput.
    """
    def uniform(k, shape, fan_in):
        bound = 1.0 / jnp.sqrt(float(fan_in))
        return jax.random.uniform(k, shape, jnp.float32, -bound, bound)

    k1w, k1b, k2w, k2b, k3w, k3b = jax.random.split(key, 6)
    fan1 = state_s + action_s
    w1 = uniform(k1w, (fan1, h1_s), fan1)
    w1s = w1[:state_s].astype(param_dtype)
    w1a = w1[state_s:].astype(param_dtype)
    b1 = uniform(k1b, (1, h1_s), fan1)
    w2 = uniform(k2w, (h1_s, h2_s), h1_s).astype(param_dtype)
    b2 = uniform(k2b, (1, h2_s), h1_s)
    w3_row = uniform(k3w, (1, h2_s), h2_s)
    b3 = uniform(k3b, (1, out_s), h2_s)
    return (w1s, w1a, b1, w2, b2, w3_row, b3)


def _reference_forward(s, a, params):
    w1s, w1a, b1, w2, b2, w3_row, b3 = params
    h1 = jnp.maximum(s @ w1s.astype(jnp.float32)
                     + a @ w1a.astype(jnp.float32) + b1, 0.0)
    h2 = jnp.maximum(h1 @ w2.astype(jnp.float32) + b2, 0.0)
    return h2 @ w3_row.T + b3


# TODO(synk): update()/soft_update()/copy_weights() are optimizer/training
# utilities, not part of the forward pass; they are intentionally not ported.

if __name__ == "__main__":
    key = jax.random.PRNGKey(0)
    k_params, k_s, k_a = jax.random.split(key, 3)

    batch, state_s, action_s = 8, 24, 4
    params = init_critic_params(k_params, state_s=state_s, action_s=action_s)

    s = jax.random.normal(k_s, (batch, state_s), jnp.float32)
    a = jax.random.normal(k_a, (batch, action_s), jnp.float32)

    q = critic_forward(s, a, params)
    q = jax.block_until_ready(q)

    q_ref = _reference_forward(s, a, params)
    assert q.shape == (batch, 1)
    assert jnp.allclose(q, q_ref, atol=1e-5, rtol=1e-5), "mismatch vs reference"

    print("KERNEL_OK")
</pallas_src>

<mosaic_0001>
module attributes {stable_mosaic.version = 11 : i64} {
  func.func @_critic_kernel(%arg0: i32, %arg1: memref<8x24xf32, #tpu.memory_space<vmem>>, %arg2: memref<8x4xf32, #tpu.memory_space<vmem>>, %arg3: memref<24x256xf32, #tpu.memory_space<vmem>>, %arg4: memref<4x256xf32, #tpu.memory_space<vmem>>, %arg5: memref<1x256xf32, #tpu.memory_space<vmem>>, %arg6: memref<256x256xf32, #tpu.memory_space<vmem>>, %arg7: memref<1x256xf32, #tpu.memory_space<vmem>>, %arg8: memref<1x256xf32, #tpu.memory_space<vmem>>, %arg9: memref<1x1xf32, #tpu.memory_space<vmem>>, %arg10: memref<8x1xf32, #tpu.memory_space<vmem>>) attributes {dimension_semantics = [#tpu.dimension_semantics<parallel>], iteration_bounds = array<i64: 1>, scalar_prefetch = 0 : i64, scratch_operands = 0 : i64, tpu.core_type = #tpu.core_type<tc>, window_params = [{transform_indices = @transform_0, window_bounds = array<i64: 8, 24>}, {transform_indices = @transform_1, window_bounds = array<i64: 8, 4>}, {pipeline_mode = #tpu.pipeline_mode<synchronous>, transform_indices = @transform_2, window_bounds = array<i64: 24, 256>}, {pipeline_mode = #tpu.pipeline_mode<synchronous>, transform_indices = @transform_3, window_bounds = array<i64: 4, 256>}, {pipeline_mode = #tpu.pipeline_mode<synchronous>, transform_indices = @transform_4, window_bounds = array<i64: 1, 256>}, {pipeline_mode = #tpu.pipeline_mode<synchronous>, transform_indices = @transform_5, window_bounds = array<i64: 256, 256>}, {pipeline_mode = #tpu.pipeline_mode<synchronous>, transform_indices = @transform_6, window_bounds = array<i64: 1, 256>}, {pipeline_mode = #tpu.pipeline_mode<synchronous>, transform_indices = @transform_7, window_bounds = array<i64: 1, 256>}, {pipeline_mode = #tpu.pipeline_mode<synchronous>, transform_indices = @transform_8, window_bounds = array<i64: 1, 1>}, {transform_indices = @transform_9, window_bounds = array<i64: 8, 1>}]} {
    %c0 = arith.constant 0 : index
    %c0_0 = arith.constant 0 : index
    %0 = vector.load %arg1[%c0, %c0_0] : memref<8x24xf32, #tpu.memory_space<vmem>>, vector<8x24xf32>
    %c0_1 = arith.constant 0 : index
    %c0_2 = arith.constant 0 : index
    %1 = vector.load %arg3[%c0_1, %c0_2] : memref<24x256xf32, #tpu.memory_space<vmem>>, vector<24x256xf32>
    %cst = arith.constant dense<0.000000e+00> : vector<8x256xf32>
    %2 = tpu.matmul %0, %1, %cst {dimension_numbers = #tpu.dot_dimension_numbers<[1], [0], [0], [1], [0, 0, 1, 1], [], []>} : vector<8x24xf32>, vector<24x256xf32>, vector<8x256xf32> -> vector<8x256xf32>
    %c0_3 = arith.constant 0 : index
    %c0_4 = arith.constant 0 : index
    %3 = vector.load %arg2[%c0_3, %c0_4] : memref<8x4xf32, #tpu.memory_space<vmem>>, vector<8x4xf32>
    %c0_5 = arith.constant 0 : index
    %c0_6 = arith.constant 0 : index
    %4 = vector.load %arg4[%c0_5, %c0_6] : memref<4x256xf32, #tpu.memory_space<vmem>>, vector<4x256xf32>
    %cst_7 = arith.constant dense<0.000000e+00> : vector<8x256xf32>
    %5 = tpu.matmul %3, %4, %cst_7 {dimension_numbers = #tpu.dot_dimension_numbers<[1], [0], [0], [1], [0, 0, 1, 1], [], []>} : vector<8x4xf32>, vector<4x256xf32>, vector<8x256xf32> -> vector<8x256xf32>
    %6 = arith.addf %2, %5 : vector<8x256xf32>
    %c0_8 = arith.constant 0 : index
    %c0_9 = arith.constant 0 : index
    %7 = vector.load %arg5[%c0_8, %c0_9] : memref<1x256xf32, #tpu.memory_space<vmem>>, vector<1x256xf32>
    %8 = vector.broadcast %7 : vector<1x256xf32> to vector<8x256xf32>
    %9 = arith.addf %6, %8 : vector<8x256xf32>
    %cst_10 = arith.constant 0.000000e+00 : f32
    %10 = vector.broadcast %cst_10 : f32 to vector<8x256xf32>
    %11 = arith.maximumf %9, %10 : vector<8x256xf32>
    %c0_11 = arith.constant 0 : index
    %c0_12 = arith.constant 0 : index
    %12 = vector.load %arg6[%c0_11, %c0_12] : memref<256x256xf32, #tpu.memory_space<vmem>>, vector<256x256xf32>
    %cst_13 = arith.constant dense<0.000000e+00> : vector<8x256xf32>
    %13 = tpu.matmul %11, %12, %cst_13 {dimension_numbers = #tpu.dot_dimension_numbers<[1], [0], [0], [1], [0, 0, 1, 1], [], []>} : vector<8x256xf32>, vector<256x256xf32>, vector<8x256xf32> -> vector<8x256xf32>
    %c0_14 = arith.constant 0 : index
    %c0_15 = arith.constant 0 : index
    %14 = vector.load %arg7[%c0_14, %c0_15] : memref<1x256xf32, #tpu.memory_space<vmem>>, vector<1x256xf32>
    %15 = vector.broadcast %14 : vector<1x256xf32> to vector<8x256xf32>
    %16 = arith.addf %13, %15 : vector<8x256xf32>
    %cst_16 = arith.constant 0.000000e+00 : f32
    %17 = vector.broadcast %cst_16 : f32 to vector<8x256xf32>
    %18 = arith.maximumf %16, %17 : vector<8x256xf32>
    %c0_17 = arith.constant 0 : index
    %c0_18 = arith.constant 0 : index
    %19 = vector.load %arg8[%c0_17, %c0_18] : memref<1x256xf32, #tpu.memory_space<vmem>>, vector<1x256xf32>
    %20 = vector.broadcast %19 : vector<1x256xf32> to vector<8x256xf32>
    %21 = arith.mulf %18, %20 : vector<8x256xf32>
    %cst_19 = arith.constant dense<0.000000e+00> : vector<8xf32>
    %22 = vector.multi_reduction <add>, %21, %cst_19 [1] : vector<8x256xf32> to vector<8xf32>
    %23 = vector.shape_cast %22 : vector<8xf32> to vector<8x1xf32>
    %c0_20 = arith.constant 0 : index
    %c0_21 = arith.constant 0 : index
    %24 = vector.load %arg9[%c0_20, %c0_21] : memref<1x1xf32, #tpu.memory_space<vmem>>, vector<1x1xf32>
    %25 = vector.broadcast %24 : vector<1x1xf32> to vector<8x1xf32>
    %26 = arith.addf %23, %25 : vector<8x1xf32>
    %c0_22 = arith.constant 0 : index
    %c0_23 = arith.constant 0 : index
    %27 = vector.load %arg10[%c0_22, %c0_23] : memref<8x1xf32, #tpu.memory_space<vmem>>, vector<8x1xf32>
    tpu.vector_store %arg10[%c0_22, %c0_23], %26 {strides = array<i32>} : memref<8x1xf32, #tpu.memory_space<vmem>>, vector<8x1xf32>,
    return
  }
  func.func @transform_0(%arg0: i32) -> (i32, i32) {
    %c0_i32 = arith.constant 0 : i32
    %c0_i32_0 = arith.constant 0 : i32
    return %arg0, %c0_i32 : i32, i32
  }
  func.func @transform_1(%arg0: i32) -> (i32, i32) {
    %c0_i32 = arith.constant 0 : i32
    %c0_i32_0 = arith.constant 0 : i32
    return %arg0, %c0_i32 : i32, i32
  }
  func.func @transform_2(%arg0: i32) -> (i32, i32) {
    %c0_i32 = arith.constant 0 : i32
    %c0_i32_0 = arith.constant 0 : i32
    %c0_i32_1 = arith.constant 0 : i32
    return %c0_i32, %c0_i32_0 : i32, i32
  }
  func.func @transform_3(%arg0: i32) -> (i32, i32) {
    %c0_i32 = arith.constant 0 : i32
    %c0_i32_0 = arith.constant 0 : i32
    %c0_i32_1 = arith.constant 0 : i32
    return %c0_i32, %c0_i32_0 : i32, i32
  }
  func.func @transform_4(%arg0: i32) -> (i32, i32) {
    %c0_i32 = arith.constant 0 : i32
    %c0_i32_0 = arith.constant 0 : i32
    %c0_i32_1 = arith.constant 0 : i32
    return %c0_i32, %c0_i32_0 : i32, i32
  }
  func.func @transform_5(%arg0: i32) -> (i32, i32) {
    %c0_i32 = arith.constant 0 : i32
    %c0_i32_0 = arith.constant 0 : i32
    %c0_i32_1 = arith.constant 0 : i32
    return %c0_i32, %c0_i32_0 : i32, i32
  }
  func.func @transform_6(%arg0: i32) -> (i32, i32) {
    %c0_i32 = arith.constant 0 : i32
    %c0_i32_0 = arith.constant 0 : i32
    %c0_i32_1 = arith.constant 0 : i32
    return %c0_i32, %c0_i32_0 : i32, i32
  }
  func.func @transform_7(%arg0: i32) -> (i32, i32) {
    %c0_i32 = arith.constant 0 : i32
    %c0_i32_0 = arith.constant 0 : i32
    %c0_i32_1 = arith.constant 0 : i32
    return %c0_i32, %c0_i32_0 : i32, i32
  }
  func.func @transform_8(%arg0: i32) -> (i32, i32) {
    %c0_i32 = arith.constant 0 : i32
    %c0_i32_0 = arith.constant 0 : i32
    %c0_i32_1 = arith.constant 0 : i32
    return %c0_i32, %c0_i32_0 : i32, i32
  }
  func.func @transform_9(%arg0: i32) -> (i32, i32) {
    %c0_i32 = arith.constant 0 : i32
    %c0_i32_0 = arith.constant 0 : i32
    return %arg0, %c0_i32 : i32, i32
  }
}

</mosaic_0001>

<llo_original>
// kernel: critic_forward.1
$region0: #{critic_forward.1}
  #allocation0 [shape = 'u32[]', space=smem, size = 0x4, offset = 0x4, fixed_abs, tag = 'smem constant byte address 0x4 - core index']
  #allocation1 [shape = 'u32[72,128]{1,0:T(1,128)}', space=vmem, size = 0x9000, scoped, tag = 'internal scratch']
  #allocation2 [shape = 'f32[1,1]{1,0:T(1,128)S(1)}', space=vmem, size = 0x200, scoped, tag = 'scoped memory for critic_forward.1']
  %s0 = inlined_call_operand.vmem [shape: f32[8,24], index: 0, kind: input, shape index: {}]
  %s1 = inlined_call_operand.vmem [shape: f32[8,4], index: 1, kind: input, shape index: {}]
  %s2 = inlined_call_operand.hbm [shape: f32[24,256], index: 2, kind: input, shape index: {}]
  %s3 = inlined_call_operand.vmem [shape: f32[4,256], index: 3, kind: input, shape index: {}]
  %s4 = inlined_call_operand.hbm [shape: f32[1,256], index: 4, kind: input, shape index: {}]
  %s5 = inlined_call_operand.hbm [shape: f32[256,256], index: 5, kind: input, shape index: {}]
  %s6 = inlined_call_operand.vmem [shape: f32[1,256], index: 6, kind: input, shape index: {}]
  %s7 = inlined_call_operand.vmem [shape: f32[1,256], index: 7, kind: input, shape index: {}]
  %s8 = inlined_call_operand.<no memory space> [shape: f32[1,1], index: 8, kind: input, shape index: {}]
  %s9 = inlined_call_operand.vmem [shape: f32[8,1], index: 9, kind: output, shape index: {}]
  %s10 = sld [smem:[#allocation0]]
  $region58: #{critic_forward.1} parent=0
    _
  %s12 = ssub.s32 1, %s10
  %s13 = scalar_select 0, %s12, %s10
  %v14 = vstv %s8
  %15 = vst [vmem:[#allocation2] sm:$0x1] %v14
  $region1: #{critic_forward.1} parent=0
    #allocation3 [shape = 'u8[24576]{0}', space=vmem, size = 0x6000, scoped, tag = 'input window, operand 2, single buffered']
    #allocation4 [shape = 's32[1]{0}', space=sflag, size = 0x4, scoped, tag = 'scoped memory for critic_forward.1']
    #allocation5 [shape = 'u8[1024]{0}', space=vmem, size = 0x400, scoped, tag = 'input window, operand 4, single buffered']
    #allocation6 [shape = 's32[1]{0}', space=sflag, size = 0x4, scoped, tag = 'scoped memory for critic_forward.1']
    #allocation7 [shape = 'u8[262144]{0}', space=vmem, size = 0x40000, scoped, tag = 'input window, operand 5, single buffered']
    %16 = vsyncpa [#allocation4], 0
    %17 = vsyncpa [#allocation6], 0
    // Predicated region
    $region2: #{critic_forward.1} parent=1 // pred_check
      _
    $region3: #{critic_forward.1} parent=1 // pred_check_branch
      %19 = sbr.rel (0) target = $region5
    $region4: #{critic_forward.1} parent=1 // pred_region
      _
    $region5: #{critic_forward.1} parent=1 // pred_fallthru
      _
    // Predicated region
    $region6: #{critic_forward.1} parent=1 // pred_check
      _
    $region7: #{critic_forward.1} parent=1 // pred_check_branch
      %21 = sbr.rel (0) target = $region9
    $region8: #{critic_forward.1} parent=1 // pred_region
      _
    $region9: #{critic_forward.1} parent=1 // pred_fallthru
      _
    // Predicated region
    $region10: #{critic_forward.1} parent=1 // pred_check
      _
    $region11: #{critic_forward.1} parent=1 // pred_check_branch
      %23 = sbr.rel (0) target = $region13
    $region12: #{critic_forward.1} parent=1 // pred_region
      %25 = vsyncadd [#allocation4], 0
      %s26 = sshll.u32 %s2, 4
      %s27 = int_to_ptr.hbm [resolvable:$true] %s26
      %s28 = sshll.u32 [#allocation3], 4
      %s29 = int_to_ptr.vmem [resolvable:$true] %s28
      %34 = dma.hbm_to_vmem [thread:$0]  %s27, 768, %s29, [#allocation4], 256, 256, 16
    $region13: #{critic_forward.1} parent=1 // pred_fallthru
      _
    // Predicated region
    $region14: #{critic_forward.1} parent=1 // pred_check
      _
    $region15: #{critic_forward.1} parent=1 // pred_check_branch
      %36 = sbr.rel (0) target = $region17
    $region16: #{critic_forward.1} parent=1 // pred_region
      _
    $region17: #{critic_forward.1} parent=1 // pred_fallthru
      _
    // Predicated region
    $region18: #{critic_forward.1} parent=1 // pred_check
      _
    $region19: #{critic_forward.1} parent=1 // pred_check_branch
      %38 = sbr.rel (0) target = $region21
    $region20: #{critic_forward.1} parent=1 // pred_region
      %40 = vsyncadd [#allocation6], 0
      %s42 = sshll.u32 %s4, 4
      %s43 = int_to_ptr.hbm [resolvable:$true] %s42
      %s44 = sshll.u32 [#allocation5], 4
      %s45 = int_to_ptr.vmem [resolvable:$true] %s44
      %47 = dma.hbm_to_vmem [thread:$0]  %s43, 32, %s45, [#allocation6]
    $region21: #{critic_forward.1} parent=1 // pred_fallthru
      _
    // Predicated region
    $region22: #{critic_forward.1} parent=1 // pred_check
      _
    $region23: #{critic_forward.1} parent=1 // pred_check_branch
      %49 = sbr.rel (0) target = $region25
    $region24: #{critic_forward.1} parent=1 // pred_region
      %51 = vsyncadd [#allocation6], 0
      %s52 = sshll.u32 %s5, 4
      %s53 = int_to_ptr.hbm [resolvable:$true] %s52
      %s54 = sshll.u32 [#allocation7], 4
      %s55 = int_to_ptr.vmem [resolvable:$true] %s54
      %60 = dma.hbm_to_vmem [thread:$0]  %s53, 8192, %s55, [#allocation6], 256, 256, 16
    $region25: #{critic_forward.1} parent=1 // pred_fallthru
      _
    // Predicated region
    $region26: #{critic_forward.1} parent=1 // pred_check
      _
    $region27: #{critic_forward.1} parent=1 // pred_check_branch
      %62 = sbr.rel (0) target = $region29
    $region28: #{critic_forward.1} parent=1 // pred_region
      _
    $region29: #{critic_forward.1} parent=1 // pred_fallthru
      _
    // Predicated region
    $region30: #{critic_forward.1} parent=1 // pred_check
      _
    $region31: #{critic_forward.1} parent=1 // pred_check_branch
      %64 = sbr.rel (0) target = $region33
    $region32: #{critic_forward.1} parent=1 // pred_region
      _
    $region33: #{critic_forward.1} parent=1 // pred_fallthru
      _
    // Predicated region
    $region34: #{critic_forward.1} parent=1 // pred_check
      _
    $region35: #{critic_forward.1} parent=1 // pred_check_branch
      %66 = sbr.rel (0) target = $region37
    $region36: #{critic_forward.1} parent=1 // pred_region
      _
    $region37: #{critic_forward.1} parent=1 // pred_fallthru
      _
    // Predicated region
    $region38: #{critic_forward.1} parent=1 // pred_check
      _
    $region39: #{critic_forward.1} parent=1 // pred_check_branch
      %68 = sbr.rel (0) target = $region41
    $region40: #{critic_forward.1} parent=1 // pred_region
      %70 = dma.done [#allocation4], 768
    $region41: #{critic_forward.1} parent=1 // pred_fallthru
      _
    // Predicated region
    $region42: #{critic_forward.1} parent=1 // pred_check
      _
    $region43: #{critic_forward.1} parent=1 // pred_check_branch
      %72 = sbr.rel (0) target = $region45
    $region44: #{critic_forward.1} parent=1 // pred_region
      %74 = dma.done [#allocation6], 32
    $region45: #{critic_forward.1} parent=1 // pred_fallthru
      _
    // Predicated region
    $region46: #{critic_forward.1} parent=1 // pred_check
      _
    $region47: #{critic_forward.1} parent=1 // pred_check_branch
      %76 = sbr.rel (0) target = $region49
    $region48: #{critic_forward.1} parent=1 // pred_region
      %78 = dma.done [#allocation6], 8192
    $region49: #{critic_forward.1} parent=1 // pred_fallthru
      _
    %v79 = vld [vmem:[%s0] sm:$0xff]
    %v80 = vld [vmem:[#allocation3] sm:$0xff]
    %v81 = vld [vmem:[#allocation3 + $0x8] sm:$0xff]
    %v82 = vld [vmem:[#allocation3 + $0x10] sm:$0xff]
    %v83 = vld [vmem:[#allocation3 + $0x18] sm:$0xff]
    %v84 = vld [vmem:[#allocation3 + $0x20] sm:$0xff]
    %v85 = vld [vmem:[#allocation3 + $0x28] sm:$0xff]
    %v86 = vld [vmem:[%s1] sm:$0xff]
    %v87 = vld [vmem:[%s3] sm:$0xff]
    %89 = vst [vmem:[#allocation1] ss:$2 sm:$0xff] %v87
    %v90 = vld.sshfl [vmem:[#allocation1] sm:$0xff pattern:$0x75316420]
    %v91 = vld.sshfl [vmem:[#allocation1 + $0x8] sm:$0xff pattern:$0x75316420]
    %vm92 = vcmask 31744
    %v94 = vsel %vm92, %v86, 0
    %vm96 = vcmask 1043456
    %v97 = vsel %vm96, %v90, 0
    %v99 = vsel %vm96, %v91, 0
    %101 = vmatpush.msra.mxu0 0.0
    %102 = vmatpush.msra.mxu0 0.0
    %103 = vmatpush.msra.mxu0 0.0
    %104 = vmatpush.msra.mxu0 0.0
    %105 = vmatpush.msra.mxu0 0.0
    %106 = vmatpush.msra.mxu0 0.0
    %107 = vmatpush.msra.mxu0 0.0
    %108 = vmatpush.msra.mxu0 0.0
    %109 = vmatpush.msra.mxu0 0.0
    %110 = vmatpush.msra.mxu0 0.0
    %111 = vmatpush.msra.mxu0 0.0
    %112 = vmatpush.msra.mxu0 0.0
    %113 = vmatpush.msra.mxu0 0.0
    %114 = vmatpush.msra.mxu0 0.0
    %115 = vmatpush.msra.mxu0 0.0
    %116 = vmatpush.msra.mxu0 %v97
    %117 = vmatmul.f32.gmra.mxu0 %v94
    %v118 = vpop.f32.mrf.mxu0
    %v119 = vadd.f32 0.0, %v118
    %120 = vdwg.mxu0
    %121 = vmatpush.msra.mxu0 0.0
    %122 = vmatpush.msra.mxu0 0.0
    %123 = vmatpush.msra.mxu0 0.0
    %124 = vmatpush.msra.mxu0 0.0
    %125 = vmatpush.msra.mxu0 0.0
    %126 = vmatpush.msra.mxu0 0.0
    %127 = vmatpush.msra.mxu0 0.0
    %128 = vmatpush.msra.mxu0 0.0
    %129 = vmatpush.msra.mxu0 0.0
    %130 = vmatpush.msra.mxu0 0.0
    %131 = vmatpush.msra.mxu0 0.0
    %132 = vmatpush.msra.mxu0 0.0
    %133 = vmatpush.msra.mxu0 0.0
    %134 = vmatpush.msra.mxu0 0.0
    %135 = vmatpush.msra.mxu0 0.0
    %136 = vmatpush.msra.mxu0 %v99
    %137 = vmatmul.f32.gmra.mxu0 %v94
    %v138 = vpop.f32.mrf.mxu0
    %v139 = vadd.f32 0.0, %v138
    %140 = vdwg.mxu0
    %vm141 = vcmask 195584
    %v143 = vsel %vm141, %v79, 0
    %145 = vmatpush.msra.mxu0 0.0
    %146 = vmatpush.msra.mxu0 0.0
    %147 = vmatpush.msra.mxu0 0.0
    %148 = vmatpush.msra.mxu0 0.0
    %149 = vmatpush.msra.mxu0 0.0
    %150 = vmatpush.msra.mxu0 0.0
    %151 = vmatpush.msra.mxu0 0.0
    %152 = vmatpush.msra.mxu0 0.0
    %153 = vmatpush.msra.mxu0 0.0
    %154 = vmatpush.msra.mxu0 0.0
    %155 = vmatpush.msra.mxu0 0.0
    %156 = vmatpush.msra.mxu0 0.0
    %157 = vmatpush.msra.mxu0 0.0
    %158 = vmatpush.msra.mxu0 %v84
    %159 = vmatpush.msra.mxu0 %v82
    %160 = vmatpush.msra.mxu0 %v80
    %161 = vmatmul.f32.gmra.mxu0 %v143
    %v162 = vpop.f32.mrf.mxu0
    %v163 = vadd.f32 %v119, %v162
    %164 = vdwg.mxu0
    %165 = vmatpush.msra.mxu0 0.0
    %166 = vmatpush.msra.mxu0 0.0
    %167 = vmatpush.msra.mxu0 0.0
    %168 = vmatpush.msra.mxu0 0.0
    %169 = vmatpush.msra.mxu0 0.0
    %170 = vmatpush.msra.mxu0 0.0
    %171 = vmatpush.msra.mxu0 0.0
    %172 = vmatpush.msra.mxu0 0.0
    %173 = vmatpush.msra.mxu0 0.0
    %174 = vmatpush.msra.mxu0 0.0
    %175 = vmatpush.msra.mxu0 0.0
    %176 = vmatpush.msra.mxu0 0.0
    %177 = vmatpush.msra.mxu0 0.0
    %178 = vmatpush.msra.mxu0 %v85
    %179 = vmatpush.msra.mxu0 %v83
    %180 = vmatpush.msra.mxu0 %v81
    %181 = vmatmul.f32.gmra.mxu0 %v143
    %v182 = vpop.f32.mrf.mxu0
    %v183 = vadd.f32 %v139, %v182
    %184 = vdwg.mxu0
    %v185 = vld [vmem:[#allocation5] sm:$0x3]
    %v187 = vperm.slane %v185, 0
    %v188 = vperm.slane %v185, 1
    %v191 = vadd.f32 %v163, %v187
    %v192 = vadd.f32 %v183, %v188
    %v193 = vmax.f32 %v191, 0.0
    %v194 = vmax.f32 %v192, 0.0
    %v195 = vld [vmem:[#allocation7] sm:$0xff]
    %v196 = vld [vmem:[#allocation7 + $0x8] sm:$0xff]
    %v197 = vld [vmem:[#allocation7 + $0x10] sm:$0xff]
    %v198 = vld [vmem:[#allocation7 + $0x18] sm:$0xff]
    %v199 = vld [vmem:[#allocation7 + $0x20] sm:$0xff]
    %v200 = vld [vmem:[#allocation7 + $0x28] sm:$0xff]
    %v201 = vld [vmem:[#allocation7 + $0x30] sm:$0xff]
    %v202 = vld [vmem:[#allocation7 + $0x38] sm:$0xff]
    %v203 = vld [vmem:[#allocation7 + $0x40] sm:$0xff]
    %v204 = vld [vmem:[#allocation7 + $0x48] sm:$0xff]
    %v205 = vld [vmem:[#allocation7 + $0x50] sm:$0xff]
    %v206 = vld [vmem:[#allocation7 + $0x58] sm:$0xff]
    %v207 = vld [vmem:[#allocation7 + $0x60] sm:$0xff]
    %v208 = vld [vmem:[#allocation7 + $0x68] sm:$0xff]
    %v209 = vld [vmem:[#allocation7 + $0x70] sm:$0xff]
    %v210 = vld [vmem:[#allocation7 + $0x78] sm:$0xff]
    %v211 = vld [vmem:[#allocation7 + $0x80] sm:$0xff]
    %v212 = vld [vmem:[#allocation7 + $0x88] sm:$0xff]
    %v213 = vld [vmem:[#allocation7 + $0x90] sm:$0xff]
    %v214 = vld [vmem:[#allocation7 + $0x98] sm:$0xff]
    %v215 = vld [vmem:[#allocation7 + $0xa0] sm:$0xff]
    %v216 = vld [vmem:[#allocation7 + $0xa8] sm:$0xff]
    %v217 = vld [vmem:[#allocation7 + $0xb0] sm:$0xff]
    %v218 = vld [vmem:[#allocation7 + $0xb8] sm:$0xff]
    %v219 = vld [vmem:[#allocation7 + $0xc0] sm:$0xff]
    %v220 = vld [vmem:[#allocation7 + $0xc8] sm:$0xff]
    %v221 = vld [vmem:[#allocation7 + $0xd0] sm:$0xff]
    %v222 = vld [vmem:[#allocation7 + $0xd8] sm:$0xff]
    %v223 = vld [vmem:[#allocation7 + $0xe0] sm:$0xff]
    %v224 = vld [vmem:[#allocation7 + $0xe8] sm:$0xff]
    %v225 = vld [vmem:[#allocation7 + $0xf0] sm:$0xff]
    %v226 = vld [vmem:[#allocation7 + $0xf8] sm:$0xff]
    %v227 = vld [vmem:[#allocation7 + $0x100] sm:$0xff]
    %v228 = vld [vmem:[#allocation7 + $0x108] sm:$0xff]
    %v229 = vld [vmem:[#allocation7 + $0x110] sm:$0xff]
    %v230 = vld [vmem:[#allocation7 + $0x118] sm:$0xff]
    %v231 = vld [vmem:[#allocation7 + $0x120] sm:$0xff]
    %v232 = vld [vmem:[#allocation7 + $0x128] sm:$0xff]
    %v233 = vld [vmem:[#allocation7 + $0x130] sm:$0xff]
    %v234 = vld [vmem:[#allocation7 + $0x138] sm:$0xff]
    %v235 = vld [vmem:[#allocation7 + $0x140] sm:$0xff]
    %v236 = vld [vmem:[#allocation7 + $0x148] sm:$0xff]
    %v237 = vld [vmem:[#allocation7 + $0x150] sm:$0xff]
    %v238 = vld [vmem:[#allocation7 + $0x158] sm:$0xff]
    %v239 = vld [vmem:[#allocation7 + $0x160] sm:$0xff]
    %v240 = vld [vmem:[#allocation7 + $0x168] sm:$0xff]
    %v241 = vld [vmem:[#allocation7 + $0x170] sm:$0xff]
    %v242 = vld [vmem:[#allocation7 + $0x178] sm:$0xff]
    %v243 = vld [vmem:[#allocation7 + $0x180] sm:$0xff]
    %v244 = vld [vmem:[#allocation7 + $0x188] sm:$0xff]
    %v245 = vld [vmem:[#allocation7 + $0x190] sm:$0xff]
    %v246 = vld [vmem:[#allocation7 + $0x198] sm:$0xff]
    %v247 = vld [vmem:[#allocation7 + $0x1a0] sm:$0xff]
    %v248 = vld [vmem:[#allocation7 + $0x1a8] sm:$0xff]
    %v249 = vld [vmem:[#allocation7 + $0x1b0] sm:$0xff]
    %v250 = vld [vmem:[#allocation7 + $0x1b8] sm:$0xff]
    %v251 = vld [vmem:[#allocation7 + $0x1c0] sm:$0xff]
    %v252 = vld [vmem:[#allocation7 + $0x1c8] sm:$0xff]
    %v253 = vld [vmem:[#allocation7 + $0x1d0] sm:$0xff]
    %v254 = vld [vmem:[#allocation7 + $0x1d8] sm:$0xff]
    %v255 = vld [vmem:[#allocation7 + $0x1e0] sm:$0xff]
    %v256 = vld [vmem:[#allocation7 + $0x1e8] sm:$0xff]
    %v257 = vld [vmem:[#allocation7 + $0x1f0] sm:$0xff]
    %v258 = vld [vmem:[#allocation7 + $0x1f8] sm:$0xff]
    %v259 = vld [vmem:[%s6] sm:$0x3]
    %v261 = vperm.slane %v259, 0
    %v262 = vperm.slane %v259, 1
    %265 = vmatpush.msra.mxu0 %v225
    %266 = vmatpush.msra.mxu0 %v223
    %267 = vmatpush.msra.mxu0 %v221
    %268 = vmatpush.msra.mxu0 %v219
    %269 = vmatpush.msra.mxu0 %v217
    %270 = vmatpush.msra.mxu0 %v215
    %271 = vmatpush.msra.mxu0 %v213
    %272 = vmatpush.msra.mxu0 %v211
    %273 = vmatpush.msra.mxu0 %v209
    %274 = vmatpush.msra.mxu0 %v207
    %275 = vmatpush.msra.mxu0 %v205
    %276 = vmatpush.msra.mxu0 %v203
    %277 = vmatpush.msra.mxu0 %v201
    %278 = vmatpush.msra.mxu0 %v199
    %279 = vmatpush.msra.mxu0 %v197
    %280 = vmatpush.msra.mxu0 %v195
    %281 = vmatmul.f32.gmra.mxu0 %v193
    %v282 = vpop.f32.mrf.mxu0
    %v283 = vadd.f32 %v261, %v282
    %284 = vdwg.mxu0
    %285 = vmatpush.msra.mxu0 %v257
    %286 = vmatpush.msra.mxu0 %v255
    %287 = vmatpush.msra.mxu0 %v253
    %288 = vmatpush.msra.mxu0 %v251
    %289 = vmatpush.msra.mxu0 %v249
    %290 = vmatpush.msra.mxu0 %v247
    %291 = vmatpush.msra.mxu0 %v245
    %292 = vmatpush.msra.mxu0 %v243
    %293 = vmatpush.msra.mxu0 %v241
    %294 = vmatpush.msra.mxu0 %v239
    %295 = vmatpush.msra.mxu0 %v237
    %296 = vmatpush.msra.mxu0 %v235
    %297 = vmatpush.msra.mxu0 %v233
    %298 = vmatpush.msra.mxu0 %v231
    %299 = vmatpush.msra.mxu0 %v229
    %300 = vmatpush.msra.mxu0 %v227
    %301 = vmatmul.f32.gmra.mxu0 %v194
    %v302 = vpop.f32.mrf.mxu0
    %v303 = vadd.f32 %v283, %v302
    %304 = vdwg.mxu0
    %305 = vmatpush.msra.mxu0 %v226
    %306 = vmatpush.msra.mxu0 %v224
    %307 = vmatpush.msra.mxu0 %v222
    %308 = vmatpush.msra.mxu0 %v220
    %309 = vmatpush.msra.mxu0 %v218
    %310 = vmatpush.msra.mxu0 %v216
    %311 = vmatpush.msra.mxu0 %v214
    %312 = vmatpush.msra.mxu0 %v212
    %313 = vmatpush.msra.mxu0 %v210
    %314 = vmatpush.msra.mxu0 %v208
    %315 = vmatpush.msra.mxu0 %v206
    %316 = vmatpush.msra.mxu0 %v204
    %317 = vmatpush.msra.mxu0 %v202
    %318 = vmatpush.msra.mxu0 %v200
    %319 = vmatpush.msra.mxu0 %v198
    %320 = vmatpush.msra.mxu0 %v196
    %321 = vmatmul.f32.gmra.mxu0 %v193
    %v322 = vpop.f32.mrf.mxu0
    %v323 = vadd.f32 %v262, %v322
    %324 = vdwg.mxu0
    %325 = vmatpush.msra.mxu0 %v258
    %326 = vmatpush.msra.mxu0 %v256
    %327 = vmatpush.msra.mxu0 %v254
    %328 = vmatpush.msra.mxu0 %v252
    %329 = vmatpush.msra.mxu0 %v250
    %330 = vmatpush.msra.mxu0 %v248
    %331 = vmatpush.msra.mxu0 %v246
    %332 = vmatpush.msra.mxu0 %v244
    %333 = vmatpush.msra.mxu0 %v242
    %334 = vmatpush.msra.mxu0 %v240
    %335 = vmatpush.msra.mxu0 %v238
    %336 = vmatpush.msra.mxu0 %v236
    %337 = vmatpush.msra.mxu0 %v234
    %338 = vmatpush.msra.mxu0 %v232
    %339 = vmatpush.msra.mxu0 %v230
    %340 = vmatpush.msra.mxu0 %v228
    %341 = vmatmul.f32.gmra.mxu0 %v194
    %v342 = vpop.f32.mrf.mxu0
    %v343 = vadd.f32 %v323, %v342
    %344 = vdwg.mxu0
    %v345 = vmax.f32 %v303, 0.0
    %v346 = vmax.f32 %v343, 0.0
    %v347 = vld [vmem:[%s7] sm:$0x3]
    %v349 = vperm.slane %v347, 0
    %v350 = vperm.slane %v347, 1
    %v353 = vmul.f32 %v345, %v349
    %v354 = vmul.f32 %v346, %v350
    %v355 = vadd.f32 %v353, %v354
    %356 = vadd.xlane.f32.xlu0 %v355
    %v357 = vpop.xlane.xlu0 %356
    %v358 = vld [vmem:[#allocation2] sm:$0x1]
    %v360 = vperm.slane %v358, 0
    %v362 = vadd.f32 %v357, %v360
    %vm363 = vcmask 7168
    %364 = vst.msk [vmem:[%s9] sm:$0xff] %vm363, %v362
    // Predicated region
    $region50: #{critic_forward.1} parent=1 // pred_check
      _
    $region51: #{critic_forward.1} parent=1 // pred_check_branch
      %366 = sbr.rel (0) target = $region53
    $region52: #{critic_forward.1} parent=1 // pred_region
      _
    $region53: #{critic_forward.1} parent=1 // pred_fallthru
      _
    // Predicated region
    $region54: #{critic_forward.1} parent=1 // pred_check
      _
    $region55: #{critic_forward.1} parent=1 // pred_check_branch
      %368 = sbr.rel (0) target = $region57
    $region56: #{critic_forward.1} parent=1 // pred_region
      _
    $region57: #{critic_forward.1} parent=1 // pred_fallthru
      _
    %369 = vsyncpa [#allocation4], 1
    %370 = vsyncpa [#allocation6], 1

</llo_original>
